<compile_context>
chip_gen: v7x
topology: tpu7x:2x2x1
jax: 0.10.0
libtpu: 0.0.40
codegen_flags: <defaults>
</compile_context>

<pallas_src>
import jax
import jax.numpy as jnp
from jax.experimental import pallas as pl
from jax.experimental.pallas import tpu as pltpu

_LANE = 128       # vreg lane width
_SUB = 8          # vreg sublane count
_TJ_MAX = 32768   # lanes per grid step -> 8*32768 = 256K samples/step
                  # VMEM/step (double buffered): (16B + 8B) * 256K * 2 = 12 MiB


def _unittest_kernel(x_ref, o_ref):
    # x_ref: [4, 8, TJ]  (feature, sublane, lane) -- each x_ref[k] is a dense
    #                    [8, TJ] slab holding 8*TJ samples of feature k.
    # o_ref: [2, 8, TJ]
    x0 = x_ref[0]
    x1 = x_ref[1]
    x2 = x_ref[2]
    x3 = x_ref[3]

    # Linear(4->2) with baked-in weights (bias is zero) + ReLU
    h0 = jnp.maximum(x2 - x0 - x1, 0.0)
    h1 = jnp.maximum(2.0 * x3 - 6.0 * x0 - x2, 0.0)

    # Linear(2->2): W2 = [[1,-1],[-1,1]], b2 = [0.2, -0.1]
    d = h0 - h1
    o_ref[0] = d + 0.2      # full [8, TJ] unmasked store
    o_ref[1] = -d - 0.1     # full [8, TJ] unmasked store


def _choose_tiling(B):
    """Pick (n_tiles, TJ, B_pad): >=2 balanced tiles, TJ % 128 == 0."""
    n = max(2, -(-B // (_SUB * _TJ_MAX)))     # cdiv, at least 2 (v7x: 2 TCs)
    if n % 2:
        n += 1                                # even tile count -> balanced TCs
    tj = -(-B // (n * _SUB))                  # lanes per tile (cdiv)
    tj = max(_LANE, -(-tj // _LANE) * _LANE)  # round up to lane multiple
    return n, tj, n * _SUB * tj


def unittest_forward_feature_major(xt):
    """Fast path: xt is feature-major [4, B]; returns [2, B] feature-major.

    No wrapper relayout besides a single pad when B is not tile-aligned.
    """
    assert xt.shape[0] == 4, "UnitTest expects 4 flattened features"
    B = xt.shape[1]
    n_tiles, tj, B_pad = _choose_tiling(B)

    if B_pad != B:
        xt = jnp.pad(xt, ((0, 0), (0, B_pad - B)))   # single fused pad
    x3d = xt.reshape(4, _SUB, B_pad // _SUB)          # free (row-major) reshape

    out3d = pl.pallas_call(
        _unittest_kernel,
        out_shape=jax.ShapeDtypeStruct((2, _SUB, B_pad // _SUB), xt.dtype),
        grid=(n_tiles,),
        in_specs=[pl.BlockSpec((4, _SUB, tj), lambda i: (0, 0, i))],
        out_specs=pl.BlockSpec((2, _SUB, tj), lambda i: (0, 0, i)),
        compiler_params=pltpu.CompilerParams(
            dimension_semantics=("parallel",),      # shard tiles across TCs
            vmem_limit_bytes=32 * 1024 * 1024,
        ),
        cost_estimate=pl.CostEstimate(
            flops=8 * B_pad,            # ~7 VPU ops / sample
            transcendentals=0,
            bytes_accessed=24 * B_pad,  # 16 B in + 8 B out per sample
        ),
    )(x3d)

    # Padded samples produce (0.2, -0.1); they are sliced off here.
    return out3d.reshape(2, B_pad)[:, :B]


def unittest_forward(x):
    """PyTorch-compatible entry point.

    x: any array with a leading batch dim whose remaining dims flatten to 4.
    Returns [B, 2] (same as the nn.Module forward).
    """
    B = x.shape[0]
    xf = x.reshape(B, -1).astype(jnp.float32)
    assert xf.shape[1] == 4, "UnitTest expects 4 flattened features"
    # One transpose to put batch on the lane axis (unavoidable for batch-major
    # callers); under jit it fuses with the pad inside the feature-major path.
    out_t = unittest_forward_feature_major(xf.T)
    return out_t.T  # [B, 2]


def _reference(x):
    # Pure-JAX reference matching the PyTorch forward exactly.
    B = x.shape[0]
    xf = x.reshape(B, -1).astype(jnp.float32)
    w1 = jnp.array([[-1.0, -1.0, 1.0, 0.0],
                    [-6.0,  0.0, -1.0, 2.0]], dtype=jnp.float32)
    b1 = jnp.array([0.0, 0.0], dtype=jnp.float32)
    w2 = jnp.array([[ 1.0, -1.0],
                    [-1.0,  1.0]], dtype=jnp.float32)
    b2 = jnp.array([0.2, -0.1], dtype=jnp.float32)
    h = jnp.maximum(xf @ w1.T + b1, 0.0)
    return h @ w2.T + b2


if __name__ == "__main__":
    key = jax.random.PRNGKey(0)
    # NCHW-style input [B, C, H, W] = [8, 1, 2, 2] which flattens to [8, 4].
    x = jax.random.normal(key, (8, 1, 2, 2), dtype=jnp.float32)

    fwd = jax.jit(unittest_forward)   # jit so the wrapper pad/transpose fuse
    out = jax.block_until_ready(fwd(x))

    ref = _reference(x)
    assert out.shape == (8, 2)
    assert jnp.allclose(out, ref, atol=1e-5, rtol=1e-5), (out, ref)

    # Also exercise the zero-relayout feature-major path.
    out_fm = jax.block_until_ready(
        jax.jit(unittest_forward_feature_major)(x.reshape(8, 4).T))
    assert jnp.allclose(out_fm.T, ref, atol=1e-5, rtol=1e-5)

    print("KERNEL_OK")
</pallas_src>

<mosaic_0001>
module attributes {stable_mosaic.version = 11 : i64} {
  func.func @_unittest_kernel(%arg0: i32, %arg1: memref<4x8x128xf32, #tpu.memory_space<vmem>>, %arg2: memref<2x8x128xf32, #tpu.memory_space<vmem>>) attributes {dimension_semantics = [#tpu.dimension_semantics<parallel>], iteration_bounds = array<i64: 2>, scalar_prefetch = 0 : i64, scratch_operands = 0 : i64, tpu.core_type = #tpu.core_type<tc>, window_params = [{transform_indices = @transform_0, window_bounds = array<i64: 4, 8, 128>}, {transform_indices = @transform_1, window_bounds = array<i64: 2, 8, 128>}]} {
    %c0 = arith.constant 0 : index
    %c0_0 = arith.constant 0 : index
    %c0_1 = arith.constant 0 : index
    %0 = vector.load %arg1[%c0, %c0_0, %c0_1] : memref<4x8x128xf32, #tpu.memory_space<vmem>>, vector<1x8x128xf32>
    %1 = vector.shape_cast %0 : vector<1x8x128xf32> to vector<8x128xf32>
    %c1 = arith.constant 1 : index
    %c0_2 = arith.constant 0 : index
    %c0_3 = arith.constant 0 : index
    %2 = vector.load %arg1[%c1, %c0_2, %c0_3] : memref<4x8x128xf32, #tpu.memory_space<vmem>>, vector<1x8x128xf32>
    %3 = vector.shape_cast %2 : vector<1x8x128xf32> to vector<8x128xf32>
    %c2 = arith.constant 2 : index
    %c0_4 = arith.constant 0 : index
    %c0_5 = arith.constant 0 : index
    %4 = vector.load %arg1[%c2, %c0_4, %c0_5] : memref<4x8x128xf32, #tpu.memory_space<vmem>>, vector<1x8x128xf32>
    %5 = vector.shape_cast %4 : vector<1x8x128xf32> to vector<8x128xf32>
    %c3 = arith.constant 3 : index
    %c0_6 = arith.constant 0 : index
    %c0_7 = arith.constant 0 : index
    %6 = vector.load %arg1[%c3, %c0_6, %c0_7] : memref<4x8x128xf32, #tpu.memory_space<vmem>>, vector<1x8x128xf32>
    %7 = vector.shape_cast %6 : vector<1x8x128xf32> to vector<8x128xf32>
    %8 = arith.subf %5, %1 : vector<8x128xf32>
    %9 = arith.subf %8, %3 : vector<8x128xf32>
    %cst = arith.constant 0.000000e+00 : f32
    %10 = vector.broadcast %cst : f32 to vector<8x128xf32>
    %11 = arith.maximumf %9, %10 : vector<8x128xf32>
    %cst_8 = arith.constant 2.000000e+00 : f32
    %12 = vector.broadcast %cst_8 : f32 to vector<8x128xf32>
    %13 = arith.mulf %12, %7 : vector<8x128xf32>
    %cst_9 = arith.constant 6.000000e+00 : f32
    %14 = vector.broadcast %cst_9 : f32 to vector<8x128xf32>
    %15 = arith.mulf %14, %1 : vector<8x128xf32>
    %16 = arith.subf %13, %15 : vector<8x128xf32>
    %17 = arith.subf %16, %5 : vector<8x128xf32>
    %cst_10 = arith.constant 0.000000e+00 : f32
    %18 = vector.broadcast %cst_10 : f32 to vector<8x128xf32>
    %19 = arith.maximumf %17, %18 : vector<8x128xf32>
    %20 = arith.subf %11, %19 : vector<8x128xf32>
    %cst_11 = arith.constant 2.000000e-01 : f32
    %21 = vector.broadcast %cst_11 : f32 to vector<8x128xf32>
    %22 = arith.addf %20, %21 : vector<8x128xf32>
    %c0_12 = arith.constant 0 : index
    %c0_13 = arith.constant 0 : index
    %c0_14 = arith.constant 0 : index
    %23 = vector.load %arg2[%c0_12, %c0_13, %c0_14] : memref<2x8x128xf32, #tpu.memory_space<vmem>>, vector<1x8x128xf32>
    %24 = vector.shape_cast %23 : vector<1x8x128xf32> to vector<8x128xf32>
    %25 = vector.shape_cast %22 : vector<8x128xf32> to vector<1x8x128xf32>
    tpu.vector_store %arg2[%c0_12, %c0_13, %c0_14], %25 {strides = array<i32>} : memref<2x8x128xf32, #tpu.memory_space<vmem>>, vector<1x8x128xf32>,
    %cst_15 = arith.constant 0.000000e+00 : f32
    %26 = vector.broadcast %cst_15 : f32 to vector<8x128xf32>
    %27 = arith.subf %26, %20 : vector<8x128xf32>
    %cst_16 = arith.constant 1.000000e-01 : f32
    %28 = vector.broadcast %cst_16 : f32 to vector<8x128xf32>
    %29 = arith.subf %27, %28 : vector<8x128xf32>
    %c1_17 = arith.constant 1 : index
    %c0_18 = arith.constant 0 : index
    %c0_19 = arith.constant 0 : index
    %30 = vector.load %arg2[%c1_17, %c0_18, %c0_19] : memref<2x8x128xf32, #tpu.memory_space<vmem>>, vector<1x8x128xf32>
    %31 = vector.shape_cast %30 : vector<1x8x128xf32> to vector<8x128xf32>
    %32 = vector.shape_cast %29 : vector<8x128xf32> to vector<1x8x128xf32>
    tpu.vector_store %arg2[%c1_17, %c0_18, %c0_19], %32 {strides = array<i32>} : memref<2x8x128xf32, #tpu.memory_space<vmem>>, vector<1x8x128xf32>,
    return
  }
  func.func @transform_0(%arg0: i32) -> (i32, i32, i32) {
    %c0_i32 = arith.constant 0 : i32
    %c0_i32_0 = arith.constant 0 : i32
    %c0_i32_1 = arith.constant 0 : i32
    return %c0_i32, %c0_i32_0, %arg0 : i32, i32, i32
  }
  func.func @transform_1(%arg0: i32) -> (i32, i32, i32) {
    %c0_i32 = arith.constant 0 : i32
    %c0_i32_0 = arith.constant 0 : i32
    %c0_i32_1 = arith.constant 0 : i32
    return %c0_i32, %c0_i32_0, %arg0 : i32, i32, i32
  }
}

</mosaic_0001>

<llo_original>
// kernel: unittest_forward.1
$region0: #{unittest_forward.1}
  #allocation0 [shape = 'u32[]', space=smem, size = 0x4, offset = 0x4, fixed_abs, tag = 'smem constant byte address 0x4 - core index']
  #allocation1 [shape = 'u32[144,128]{1,0:T(1,128)}', space=vmem, size = 0x12000, scoped, tag = 'internal scratch']
  %s0 = inlined_call_operand.vmem [shape: f32[4,8,256], index: 0, kind: input, shape index: {}]
  %s1 = inlined_call_operand.vmem [shape: f32[2,8,256], index: 1, kind: output, shape index: {}]
  %s2 = sld [smem:[#allocation0]]
  $region109: #{unittest_forward.1} parent=0
    _
  %s4 = ssub.s32 1, %s2
  %s5 = scalar_select 0, %s4, %s2
  $region1: #{unittest_forward.1} parent=0
    #allocation2 [shape = 'u8[32768]{0}', space=vmem, size = 0x8000, scoped, tag = 'input window, operand 0']
    #allocation3 [shape = 'u8[16384]{0}', space=vmem, size = 0x4000, scoped, tag = 'output window, operand 0']
    loop: start=0, step=1, limit=4
    $region2: #{unittest_forward.1} parent=1 // loop_pre_header
      _
    $region3: #{unittest_forward.1} parent=1 // loop_header
      %s7 = sphi 0, %s11
      %p8 = scmp.ge.s32.totalorder %s7, 4
      %s17 = sphi 0, %s19
      %s20 = sphi 0, %s17
      %s21 = sphi 0, %s20
      %s37 = sphi 0, %s21
      %s43 = sphi 0, %s45
      %s46 = sphi 0, %s43
      %s47 = sphi 0, %s46
      %s63 = sphi 0, %s47
    $region4: #{unittest_forward.1} parent=1 // loop_header_branch
      %10 = sbr.rel (%p8) target = $region8
    $region5: #{unittest_forward.1} parent=1 // loop_body
      %s12 = ssub.s32 %s7, 1
      %s13 = ssub.s32 %s7, 2
      %s14 = sadd.s32 %s7, 1
      %s15 = ssub.s32 %s7, %s14
      %p16 = scmp.eq.s32.totalorder %s15, 0
      %s18 = sadd.s32 %s17, 1
      %s19 = scalar_select %p16, %s17, %s18
      %p22 = pneg %p16
      %p23 = scmp.eq.s32.totalorder %s7, 1
      %p24 = por %p22, %p23
      %p25 = scmp.ne.s32.totalorder %s17, %s20
      %p26 = scmp.eq.s32.totalorder %s7, 0
      %p27 = por %p25, %p26
      %p28 = scmp.ne.s32.totalorder %s17, %s20
      %p29 = scmp.eq.s32.totalorder %s12, 1
      %p30 = por %p28, %p29
      %p31 = scmp.ne.s32.totalorder %s20, %s21
      %p32 = scmp.eq.s32.totalorder %s12, 0
      %p33 = por %p31, %p32
      %p34 = scmp.ne.s32.totalorder %s20, %s21
      %p35 = scmp.eq.s32.totalorder %s13, 1
      %p36 = por %p34, %p35
      %p38 = scmp.ne.s32.totalorder %s21, %s37
      %p39 = scmp.eq.s32.totalorder %s13, 0
      %p40 = por %p38, %p39
      %s41 = ssub.s32 %s7, %s14
      %p42 = scmp.eq.s32.totalorder %s41, 0
      %s44 = sadd.s32 %s43, 1
      %s45 = scalar_select %p42, %s43, %s44
      %p48 = pneg %p42
      %p49 = scmp.eq.s32.totalorder %s7, 1
      %p50 = por %p48, %p49
      %p51 = scmp.ne.s32.totalorder %s43, %s46
      %p52 = scmp.eq.s32.totalorder %s7, 0
      %p53 = por %p51, %p52
      %p54 = scmp.ne.s32.totalorder %s43, %s46
      %p55 = scmp.eq.s32.totalorder %s12, 1
      %p56 = por %p54, %p55
      %p57 = scmp.ne.s32.totalorder %s46, %s47
      %p58 = scmp.eq.s32.totalorder %s12, 0
      %p59 = por %p57, %p58
      %p60 = scmp.ne.s32.totalorder %s46, %s47
      %p61 = scmp.eq.s32.totalorder %s13, 1
      %p62 = por %p60, %p61
      %p64 = scmp.ne.s32.totalorder %s47, %s63
      %p65 = scmp.eq.s32.totalorder %s13, 0
      %p66 = por %p64, %p65
      %p67 = scmp.le.s32.totalorder 1, %s7
      %p68 = scmp.lt.s32.totalorder %s7, 3
      %p69 = pnand %p67, %p68
      %p70 = pneg %p69
      // Predicated region
      $region9: #{unittest_forward.1} parent=5 // pred_check
        _
      $region10: #{unittest_forward.1} parent=5 // pred_check_branch
        %72 = sbr.rel (%p69) target = $region12
      $region11: #{unittest_forward.1} parent=5 // pred_region
        %s73 = ssub.s32 %s7, 1
      $region12: #{unittest_forward.1} parent=5 // pred_fallthru
        _
      %p74 = scmp.lt.s32.totalorder %s7, 2
      // Predicated region
      $region13: #{unittest_forward.1} parent=5 // pred_check
        %p75 = pneg %p74
      $region14: #{unittest_forward.1} parent=5 // pred_check_branch
        %77 = sbr.rel (%p75) target = $region16
      $region15: #{unittest_forward.1} parent=5 // pred_region
        // Predicated region
        $region17: #{unittest_forward.1} parent=15 // pred_check
          %p78 = pneg %p27
        $region18: #{unittest_forward.1} parent=15 // pred_check_branch
          %80 = sbr.rel (%p78) target = $region20
        $region19: #{unittest_forward.1} parent=15 // pred_region
          %s81 = sand.u32 %s17, 1
          %s82 = sand.u32 %s17, 1
          %s83 = smul.addr %s82, 32
          %s84 = scalar_lea.vmem [#allocation2], %s83
          %s85 = smul.addr %s7, 8
          %s86 = scalar_lea.vmem %s0, %s85
          // Predicated region
          $region21: #{unittest_forward.1} parent=19 // pred_check
            _
          $region22: #{unittest_forward.1} parent=19 // pred_check_branch
            %88 = sbr.rel (0) target = $region24
          $region23: #{unittest_forward.1} parent=19 // pred_region
            // Predicated region
            $region25: #{unittest_forward.1} parent=23 // pred_check
              _
            $region26: #{unittest_forward.1} parent=23 // pred_check_branch
              %90 = sbr.rel (0) target = $region28
            $region27: #{unittest_forward.1} parent=23 // pred_region
              // Predicated region
              $region40: #{unittest_forward.1} parent=27 // pred_check
                _
              $region41: #{unittest_forward.1} parent=27 // pred_check_branch
                %111 = sbr.rel (0) target = $region43
              $region42: #{unittest_forward.1} parent=27 // pred_region
                loop: start=0, step=1, limit=1
                $region44: #{unittest_forward.1} parent=42 // loop_pre_header
                  _
                $region45: #{unittest_forward.1} parent=42 // loop_header
                  %s113 = sphi 0, %s117
                  %p114 = scmp.ge.s32.totalorder %s113, 1
                  %s118 = sphi %s86, %s86
                  %s119 = sphi %s84, %s84
                $region46: #{unittest_forward.1} parent=42 // loop_header_branch
                  %116 = sbr.rel (%p114) target = $region50
                $region47: #{unittest_forward.1} parent=42 // loop_body
                  %v120 = vld [vmem:[%s118] sm:$0xff]
                  %121 = vst [vmem:[%s119] sm:$0xff] %v120
                  %v122 = vld [vmem:[%s118 + $0x10] sm:$0xff]
                  %123 = vst [vmem:[%s119 + $0x8] sm:$0xff] %v122
                  %v124 = vld [vmem:[%s118 + $0x20] sm:$0xff]
                  %125 = vst [vmem:[%s119 + $0x10] sm:$0xff] %v124
                  %v126 = vld [vmem:[%s118 + $0x30] sm:$0xff]
                  %127 = vst [vmem:[%s119 + $0x18] sm:$0xff] %v126
                $region48: #{unittest_forward.1} parent=42 // loop_footer
                  %s117 = sadd.s32 1, %s113
                $region49: #{unittest_forward.1} parent=42 // loop_footer_branch
                  %112 = sbr.rel target = $region45
                $region50: #{unittest_forward.1} parent=42 // loop_exit
                  _
              $region43: #{unittest_forward.1} parent=27 // pred_fallthru
                _
              // Predicated region
              $region51: #{unittest_forward.1} parent=27 // pred_check
                _
              $region52: #{unittest_forward.1} parent=27 // pred_check_branch
                %129 = sbr.rel target = $region54
              $region53: #{unittest_forward.1} parent=27 // pred_region
                _
              $region54: #{unittest_forward.1} parent=27 // pred_fallthru
                _
            $region28: #{unittest_forward.1} parent=23 // pred_fallthru
              _
            // Predicated region
            $region29: #{unittest_forward.1} parent=23 // pred_check
              _
            $region30: #{unittest_forward.1} parent=23 // pred_check_branch
              %92 = sbr.rel target = $region32
            $region31: #{unittest_forward.1} parent=23 // pred_region
              loop: start=0, step=1, limit=1
              $region33: #{unittest_forward.1} parent=31 // loop_pre_header
                _
              $region34: #{unittest_forward.1} parent=31 // loop_header
                %s95 = sphi 0, %s99
                %p96 = scmp.ge.s32.totalorder %s95, 1
                %s100 = sphi %s86, %s86
                %s101 = sphi %s84, %s84
              $region35: #{unittest_forward.1} parent=31 // loop_header_branch
                %98 = sbr.rel (%p96) target = $region39
              $region36: #{unittest_forward.1} parent=31 // loop_body
                %v102 = vld [vmem:[%s100] sm:$0xff]
                %103 = vst [vmem:[%s101] sm:$0xff] %v102
                %v104 = vld [vmem:[%s100 + $0x10] sm:$0xff]
                %105 = vst [vmem:[%s101 + $0x8] sm:$0xff] %v104
                %v106 = vld [vmem:[%s100 + $0x20] sm:$0xff]
                %107 = vst [vmem:[%s101 + $0x10] sm:$0xff] %v106
                %v108 = vld [vmem:[%s100 + $0x30] sm:$0xff]
                %109 = vst [vmem:[%s101 + $0x18] sm:$0xff] %v108
              $region37: #{unittest_forward.1} parent=31 // loop_footer
                %s99 = sadd.s32 1, %s95
              $region38: #{unittest_forward.1} parent=31 // loop_footer_branch
                %94 = sbr.rel target = $region34
              $region39: #{unittest_forward.1} parent=31 // loop_exit
                _
            $region32: #{unittest_forward.1} parent=23 // pred_fallthru
              _
          $region24: #{unittest_forward.1} parent=19 // pred_fallthru
            _
          %130 = vnop
        $region20: #{unittest_forward.1} parent=15 // pred_fallthru
          _
      $region16: #{unittest_forward.1} parent=5 // pred_fallthru
        _
      %p131 = scmp.le.s32.totalorder 1, %s7
      %p132 = scmp.lt.s32.totalorder %s7, 3
      %p133 = pnand %p131, %p132
      %p134 = pneg %p133
      // Predicated region
      $region55: #{unittest_forward.1} parent=5 // pred_check
        _
      $region56: #{unittest_forward.1} parent=5 // pred_check_branch
        %136 = sbr.rel (%p133) target = $region58
      $region57: #{unittest_forward.1} parent=5 // pred_region
        %s137 = ssub.s32 %s7, 1
        %s138 = sand.u32 %s20, 1
        %s139 = sand.u32 %s20, 1
        %s140 = smul.addr %s139, 32
        %s141 = scalar_lea.vmem [#allocation2], %s140
        // Predicated region
        $region59: #{unittest_forward.1} parent=57 // pred_check
          %p142 = pneg %p33
        $region60: #{unittest_forward.1} parent=57 // pred_check_branch
          %144 = sbr.rel (%p142) target = $region62
        $region61: #{unittest_forward.1} parent=57 // pred_region
          _
        $region62: #{unittest_forward.1} parent=57 // pred_fallthru
          _
        %s145 = sand.u32 %s20, 1
        %s146 = sand.u32 %s20, 1
        %s147 = smul.addr %s146, 32
        %s148 = scalar_lea.vmem [#allocation2], %s147
        %p149 = pneg %p33
        %p150 = pneg %p30
        %p151 = pneg %p59
        %p152 = pneg %p56
        %s153 = sand.u32 %s46, 1
        %s154 = sand.u32 %s46, 1
        %s155 = smul.addr %s154, 16
        %s156 = scalar_lea.vmem [#allocation3], %s155
        %v157 = vld [vmem:[%s141] sm:$0xff]
        %s158 = scalar_lea.vmem %s141, 8 [#allocation2]
        %v159 = vld [vmem:[%s158] sm:$0xff]
        %s160 = scalar_lea.vmem %s141, 16 [#allocation2]
        %v161 = vld [vmem:[%s160] sm:$0xff]
        %s162 = scalar_lea.vmem %s141, 24 [#allocation2]
        %v163 = vld [vmem:[%s162] sm:$0xff]
        %v164 = vsub.f32 %v161, %v157
        %v165 = vsub.f32 %v164, %v159
        %v166 = vmax.f32 %v165, 0.0
        %v167 = vmul.f32 %v163, 2.0
        %v168 = vmul.f32 %v157, 6.0
        %v169 = vsub.f32 %v167, %v168
        %v170 = vsub.f32 %v169, %v161
        %v171 = vmax.f32 %v170, 0.0
        %v172 = vsub.f32 %v166, %v171
        %v173 = vadd.f32 %v172, 0.2
        %174 = vst [vmem:[%s156] sm:$0xff] %v173
        %v175 = vsub.f32 0.0, %v172
        %v176 = vsub.f32 %v175, 0.1
        %s177 = scalar_lea.vmem %s156, 8 [#allocation3]
        %178 = vst [vmem:[%s177] sm:$0xff] %v176
        %s179 = sand.u32 %s46, 1
        %s180 = sand.u32 %s46, 1
        %s181 = smul.addr %s180, 16
        %s182 = scalar_lea.vmem [#allocation3], %s181
        // Predicated region
        $region63: #{unittest_forward.1} parent=57 // pred_check
          %p183 = pneg %p56
        $region64: #{unittest_forward.1} parent=57 // pred_check_branch
          %185 = sbr.rel (%p183) target = $region66
        $region65: #{unittest_forward.1} parent=57 // pred_region
          %s186 = smul.addr %s12, 8
          %s187 = scalar_lea.vmem %s1, %s186
          // Predicated region
          $region67: #{unittest_forward.1} parent=65 // pred_check
            _
          $region68: #{unittest_forward.1} parent=65 // pred_check_branch
            %189 = sbr.rel (0) target = $region70
          $region69: #{unittest_forward.1} parent=65 // pred_region
            // Predicated region
            $region71: #{unittest_forward.1} parent=69 // pred_check
              _
            $region72: #{unittest_forward.1} parent=69 // pred_check_branch
              %191 = sbr.rel (0) target = $region74
            $region73: #{unittest_forward.1} parent=69 // pred_region
              // Predicated region
              $region86: #{unittest_forward.1} parent=73 // pred_check
                _
              $region87: #{unittest_forward.1} parent=73 // pred_check_branch
                %208 = sbr.rel (0) target = $region89
              $region88: #{unittest_forward.1} parent=73 // pred_region
                loop: start=0, step=1, limit=1
                $region90: #{unittest_forward.1} parent=88 // loop_pre_header
                  _
                $region91: #{unittest_forward.1} parent=88 // loop_header
                  %s210 = sphi 0, %s214
                  %p211 = scmp.ge.s32.totalorder %s210, 1
                  %s215 = sphi %s182, %s182
                  %s216 = sphi %s187, %s187
                $region92: #{unittest_forward.1} parent=88 // loop_header_branch
                  %213 = sbr.rel (%p211) target = $region96
                $region93: #{unittest_forward.1} parent=88 // loop_body
                  %v217 = vld [vmem:[%s215] sm:$0xff]
                  %218 = vst [vmem:[%s216] sm:$0xff] %v217
                  %v219 = vld [vmem:[%s215 + $0x8] sm:$0xff]
                  %220 = vst [vmem:[%s216 + $0x10] sm:$0xff] %v219
                $region94: #{unittest_forward.1} parent=88 // loop_footer
                  %s214 = sadd.s32 1, %s210
                $region95: #{unittest_forward.1} parent=88 // loop_footer_branch
                  %209 = sbr.rel target = $region91
                $region96: #{unittest_forward.1} parent=88 // loop_exit
                  _
              $region89: #{unittest_forward.1} parent=73 // pred_fallthru
                _
              // Predicated region
              $region97: #{unittest_forward.1} parent=73 // pred_check
                _
              $region98: #{unittest_forward.1} parent=73 // pred_check_branch
                %222 = sbr.rel target = $region100
              $region99: #{unittest_forward.1} parent=73 // pred_region
                _
              $region100: #{unittest_forward.1} parent=73 // pred_fallthru
                _
            $region74: #{unittest_forward.1} parent=69 // pred_fallthru
              _
            // Predicated region
            $region75: #{unittest_forward.1} parent=69 // pred_check
              _
            $region76: #{unittest_forward.1} parent=69 // pred_check_branch
              %193 = sbr.rel target = $region78
            $region77: #{unittest_forward.1} parent=69 // pred_region
              loop: start=0, step=1, limit=1
              $region79: #{unittest_forward.1} parent=77 // loop_pre_header
                _
              $region80: #{unittest_forward.1} parent=77 // loop_header
                %s196 = sphi 0, %s200
                %p197 = scmp.ge.s32.totalorder %s196, 1
                %s201 = sphi %s182, %s182
                %s202 = sphi %s187, %s187
              $region81: #{unittest_forward.1} parent=77 // loop_header_branch
                %199 = sbr.rel (%p197) target = $region85
              $region82: #{unittest_forward.1} parent=77 // loop_body
                %v203 = vld [vmem:[%s201] sm:$0xff]
                %204 = vst [vmem:[%s202] sm:$0xff] %v203
                %v205 = vld [vmem:[%s201 + $0x8] sm:$0xff]
                %206 = vst [vmem:[%s202 + $0x10] sm:$0xff] %v205
              $region83: #{unittest_forward.1} parent=77 // loop_footer
                %s200 = sadd.s32 1, %s196
              $region84: #{unittest_forward.1} parent=77 // loop_footer_branch
                %195 = sbr.rel target = $region80
              $region85: #{unittest_forward.1} parent=77 // loop_exit
                _
            $region78: #{unittest_forward.1} parent=69 // pred_fallthru
              _
          $region70: #{unittest_forward.1} parent=65 // pred_fallthru
            _
          %223 = vnop
        $region66: #{unittest_forward.1} parent=57 // pred_fallthru
          _
      $region58: #{unittest_forward.1} parent=5 // pred_fallthru
        _
      %p224 = scmp.le.s32.totalorder 2, %s7
      // Predicated region
      $region101: #{unittest_forward.1} parent=5 // pred_check
        %p225 = pneg %p224
      $region102: #{unittest_forward.1} parent=5 // pred_check_branch
        %227 = sbr.rel (%p225) target = $region104
      $region103: #{unittest_forward.1} parent=5 // pred_region
        %s228 = ssub.s32 %s7, 2
        // Predicated region
        $region105: #{unittest_forward.1} parent=103 // pred_check
          %p229 = pneg %p62
        $region106: #{unittest_forward.1} parent=103 // pred_check_branch
          %231 = sbr.rel (%p229) target = $region108
        $region107: #{unittest_forward.1} parent=103 // pred_region
          %s232 = sand.u32 %s47, 1
          %s233 = sand.u32 %s47, 1
          %s234 = smul.addr %s233, 16
          %s235 = scalar_lea.vmem [#allocation3], %s234
        $region108: #{unittest_forward.1} parent=103 // pred_fallthru
          _
      $region104: #{unittest_forward.1} parent=5 // pred_fallthru
        _
    $region6: #{unittest_forward.1} parent=1 // loop_footer
      %s11 = sadd.s32 1, %s7
    $region7: #{unittest_forward.1} parent=1 // loop_footer_branch
      %6 = sbr.rel target = $region3
    $region8: #{unittest_forward.1} parent=1 // loop_exit
      _

</llo_original>
